<compile_context>
chip_gen: v5e
topology: v5e:2x2
jax: 0.10.0
libtpu: 0.0.40
codegen_flags: <defaults>
</compile_context>

<pallas_src>
import jax
import jax.numpy as jnp
from jax.experimental import pallas as pl
from jax.experimental.pallas import tpu as pltpu


def _round_up(n, m):
    return ((n + m - 1) // m) * m


def nn2_kernel(x_ref, a_ref, w1_ref, w2a_ref, b1_ref, w2h_ref, b2_ref,
               w3_ref, b3_ref, o_ref):
    # fc1: bf16 operands, f32 accumulation on the MXU; bias + relu in f32.
    xb = x_ref[...].astype(jnp.bfloat16)
    ab = a_ref[...].astype(jnp.bfloat16)
    h1 = jnp.dot(xb, w1_ref[...], preferred_element_type=jnp.float32)
    h1 = jnp.maximum(h1 + b1_ref[...], 0.0)

    # fc2 on cat([h1, a]) == h1 @ W2_h + a @ W2_a + b2, then relu.
    h2 = jnp.dot(h1.astype(jnp.bfloat16), w2h_ref[...],
                 preferred_element_type=jnp.float32)
    h2 = h2 + jnp.dot(ab, w2a_ref[...], preferred_element_type=jnp.float32)
    h2 = jnp.maximum(h2 + b2_ref[...], 0.0)

    # fc3 (output width 1): VPU multiply + XLU lane reduction instead of MXU.
    out = jnp.sum(h2 * w3_ref[...], axis=-1, keepdims=True) + b3_ref[...]
    o_ref[...] = out.astype(o_ref.dtype)


def init_params(key, nb_states, nb_actions, hidden1, hidden2):
    """Deterministic init mimicking nn.Linear's U(-1/sqrt(fan_in), 1/sqrt(fan_in))."""
    def linear(key, fan_in, fan_out):
        kw, kb = jax.random.split(key)
        bound = 1.0 / jnp.sqrt(fan_in)
        w = jax.random.uniform(kw, (fan_in, fan_out), jnp.float32, -bound, bound)
        b = jax.random.uniform(kb, (1, fan_out), jnp.float32, -bound, bound)
        return w, b

    k1, k2, k3 = jax.random.split(key, 3)
    w1, b1 = linear(k1, nb_states, hidden1)             # fc1
    w2, b2 = linear(k2, hidden1 + nb_actions, hidden2)  # fc2 (acts on concat)
    w3, b3 = linear(k3, hidden2, 1)                     # fc3
    w2h = w2[:hidden1, :]
    w2a = w2[hidden1:, :]
    return (w1, b1, w2h, w2a, b2, w3, b3)


def pack_params(params, nb_states, nb_actions, hidden1, hidden2):
    """One-off packing: lane-pad hidden dims to 128 and cast matmul weights to
    bf16 (biases and the fc3 row stay f32; they are used on the VPU)."""
    del nb_states, nb_actions
    w1, b1, w2h, w2a, b2, w3, b3 = params
    h1p = _round_up(hidden1, 128)
    h2p = _round_up(hidden2, 128)

    w1p = jnp.pad(w1, ((0, 0), (0, h1p - hidden1))).astype(jnp.bfloat16)
    b1p = jnp.pad(b1, ((0, 0), (0, h1p - hidden1)))
    w2hp = jnp.pad(w2h, ((0, h1p - hidden1), (0, h2p - hidden2))).astype(jnp.bfloat16)
    w2ap = jnp.pad(w2a, ((0, 0), (0, h2p - hidden2))).astype(jnp.bfloat16)
    b2p = jnp.pad(b2, ((0, 0), (0, h2p - hidden2)))
    w3p = jnp.pad(w3.reshape(1, hidden2), ((0, 0), (0, h2p - hidden2)))
    b3p = b3.reshape(1, 1)
    return (w1p, w2ap, b1p, w2hp, b2p, w3p, b3p)


def _choose_tile_b(batch, requested):
    """Batch tile: single sublane-rounded tile for small batches; for large
    batches use 256-aligned tiles (MXU M granularity on v6e/v7x) capped so
    there are at least two grid blocks (v7x megacore sharding)."""
    if batch <= 256:
        return _round_up(batch, 8)
    tile = min(requested, _round_up(pl.cdiv(batch, 2), 256))
    return max(256, _round_up(tile, 256))


def nn2_forward(x, a, packed, *, tile_b=1024):
    """x: (B, nb_states), a: (B, nb_actions) -> (B, 1)."""
    w1p, w2ap, b1p, w2hp, b2p, w3p, b3p = packed
    B, S = x.shape
    A = a.shape[1]
    h1p = w1p.shape[1]
    h2p = w2hp.shape[1]

    tb = _choose_tile_b(B, tile_b)
    num_blocks = pl.cdiv(B, tb)

    weight_bytes = sum(int(w.size) * w.dtype.itemsize
                       for w in (w1p, w2ap, b1p, w2hp, b2p, w3p, b3p))
    cost = pl.CostEstimate(
        flops=2 * B * (S * h1p + A * h2p + h1p * h2p + h2p),
        transcendentals=0,
        bytes_accessed=B * (S + A) * 4 + weight_bytes + B * 4,
    )

    out = pl.pallas_call(
        nn2_kernel,
        out_shape=jax.ShapeDtypeStruct((B, 1), jnp.float32),
        grid_spec=pltpu.PrefetchScalarGridSpec(
            num_scalar_prefetch=0,
            grid=(num_blocks,),
            in_specs=[
                pl.BlockSpec((tb, S), lambda i: (i, 0)),      # x tile
                pl.BlockSpec((tb, A), lambda i: (i, 0)),      # a tile
                pl.BlockSpec(w1p.shape, lambda i: (0, 0)),    # W1   (bf16)
                pl.BlockSpec(w2ap.shape, lambda i: (0, 0)),   # W2_a (bf16)
                pl.BlockSpec(b1p.shape, lambda i: (0, 0)),    # b1   (f32)
                pl.BlockSpec(w2hp.shape, lambda i: (0, 0)),   # W2_h (bf16)
                pl.BlockSpec(b2p.shape, lambda i: (0, 0)),    # b2   (f32)
                pl.BlockSpec(w3p.shape, lambda i: (0, 0)),    # w3   (f32)
                pl.BlockSpec(b3p.shape, lambda i: (0, 0)),    # b3   (f32)
            ],
            out_specs=pl.BlockSpec((tb, 1), lambda i: (i, 0)),
        ),
        compiler_params=pltpu.CompilerParams(
            dimension_semantics=("parallel",),
            vmem_limit_bytes=32 * 1024 * 1024,
        ),
        cost_estimate=cost,
    )(x.astype(jnp.float32), a.astype(jnp.float32),
      w1p, w2ap, b1p, w2hp, b2p, w3p, b3p)
    return out


def nn2_reference(x, a, params):
    """Plain-JAX f32 reference of the PyTorch forward (uses explicit concat)."""
    w1, b1, w2h, w2a, b2, w3, b3 = params
    w2 = jnp.concatenate([w2h, w2a], axis=0)
    h1 = jnp.maximum(x @ w1 + b1, 0.0)
    h2 = jnp.maximum(jnp.concatenate([h1, a], axis=1) @ w2 + b2, 0.0)
    return h2 @ w3 + b3


if __name__ == "__main__":
    NB_STATES, NB_ACTIONS = 32, 8
    HIDDEN1, HIDDEN2 = 64, 32

    key = jax.random.PRNGKey(0)
    kx, ka, kp, kx2, ka2 = jax.random.split(key, 5)
    params = init_params(kp, NB_STATES, NB_ACTIONS, HIDDEN1, HIDDEN2)
    packed = pack_params(params, NB_STATES, NB_ACTIONS, HIDDEN1, HIDDEN2)

    # bf16 weights/activations with f32 accumulation -> loosened tolerance.
    TOL = 5e-2

    # Small-batch case (single tile, block shapes equal to full dims).
    B = 8
    x = jax.random.normal(kx, (B, NB_STATES), jnp.float32)
    a = jax.random.normal(ka, (B, NB_ACTIONS), jnp.float32)
    out = jax.block_until_ready(nn2_forward(x, a, packed))
    ref = nn2_reference(x, a, params)
    assert out.shape == (B, 1)
    assert jnp.allclose(out, ref, atol=TOL, rtol=TOL), \
        float(jnp.max(jnp.abs(out - ref)))

    # Larger batch exercising multi-block grid + masked partial tail block
    # (no wrapper-side padding pass).
    B2 = 300
    x2 = jax.random.normal(kx2, (B2, NB_STATES), jnp.float32)
    a2 = jax.random.normal(ka2, (B2, NB_ACTIONS), jnp.float32)
    out2 = jax.block_until_ready(nn2_forward(x2, a2, packed))
    ref2 = nn2_reference(x2, a2, params)
    assert out2.shape == (B2, 1)
    assert jnp.allclose(out2, ref2, atol=TOL, rtol=TOL), \
        float(jnp.max(jnp.abs(out2 - ref2)))

    print("KERNEL_OK")
</pallas_src>

<mosaic_0001>
module attributes {stable_mosaic.version = 11 : i64} {
  func.func @nn2_kernel(%arg0: i32, %arg1: memref<8x32xf32, #tpu.memory_space<vmem>>, %arg2: memref<8x8xf32, #tpu.memory_space<vmem>>, %arg3: memref<32x128xbf16, #tpu.memory_space<vmem>>, %arg4: memref<8x128xbf16, #tpu.memory_space<vmem>>, %arg5: memref<1x128xf32, #tpu.memory_space<vmem>>, %arg6: memref<128x128xbf16, #tpu.memory_space<vmem>>, %arg7: memref<1x128xf32, #tpu.memory_space<vmem>>, %arg8: memref<1x128xf32, #tpu.memory_space<vmem>>, %arg9: memref<1x1xf32, #tpu.memory_space<vmem>>, %arg10: memref<8x1xf32, #tpu.memory_space<vmem>>) attributes {dimension_semantics = [#tpu.dimension_semantics<parallel>], iteration_bounds = array<i64: 1>, scalar_prefetch = 0 : i64, scratch_operands = 0 : i64, tpu.core_type = #tpu.core_type<tc>, window_params = [{transform_indices = @transform_0, window_bounds = array<i64: 8, 32>}, {transform_indices = @transform_1, window_bounds = array<i64: 8, 8>}, {pipeline_mode = #tpu.pipeline_mode<synchronous>, transform_indices = @transform_2, window_bounds = array<i64: 32, 128>}, {pipeline_mode = #tpu.pipeline_mode<synchronous>, transform_indices = @transform_3, window_bounds = array<i64: 8, 128>}, {pipeline_mode = #tpu.pipeline_mode<synchronous>, transform_indices = @transform_4, window_bounds = array<i64: 1, 128>}, {pipeline_mode = #tpu.pipeline_mode<synchronous>, transform_indices = @transform_5, window_bounds = array<i64: 128, 128>}, {pipeline_mode = #tpu.pipeline_mode<synchronous>, transform_indices = @transform_6, window_bounds = array<i64: 1, 128>}, {pipeline_mode = #tpu.pipeline_mode<synchronous>, transform_indices = @transform_7, window_bounds = array<i64: 1, 128>}, {pipeline_mode = #tpu.pipeline_mode<synchronous>, transform_indices = @transform_8, window_bounds = array<i64: 1, 1>}, {transform_indices = @transform_9, window_bounds = array<i64: 8, 1>}]} {
    %c0 = arith.constant 0 : index
    %c0_0 = arith.constant 0 : index
    %0 = vector.load %arg1[%c0, %c0_0] : memref<8x32xf32, #tpu.memory_space<vmem>>, vector<8x32xf32>
    %1 = arith.truncf %0 : vector<8x32xf32> to vector<8x32xbf16>
    %c0_1 = arith.constant 0 : index
    %c0_2 = arith.constant 0 : index
    %2 = vector.load %arg2[%c0_1, %c0_2] : memref<8x8xf32, #tpu.memory_space<vmem>>, vector<8x8xf32>
    %3 = arith.truncf %2 : vector<8x8xf32> to vector<8x8xbf16>
    %c0_3 = arith.constant 0 : index
    %c0_4 = arith.constant 0 : index
    %4 = vector.load %arg3[%c0_3, %c0_4] : memref<32x128xbf16, #tpu.memory_space<vmem>>, vector<32x128xbf16>
    %cst = arith.constant dense<0.000000e+00> : vector<8x128xf32>
    %5 = tpu.matmul %1, %4, %cst {dimension_numbers = #tpu.dot_dimension_numbers<[1], [0], [0], [1], [0, 0, 1, 1], [], []>} : vector<8x32xbf16>, vector<32x128xbf16>, vector<8x128xf32> -> vector<8x128xf32>
    %c0_5 = arith.constant 0 : index
    %c0_6 = arith.constant 0 : index
    %6 = vector.load %arg5[%c0_5, %c0_6] : memref<1x128xf32, #tpu.memory_space<vmem>>, vector<1x128xf32>
    %7 = vector.broadcast %6 : vector<1x128xf32> to vector<8x128xf32>
    %8 = arith.addf %5, %7 : vector<8x128xf32>
    %cst_7 = arith.constant 0.000000e+00 : f32
    %9 = vector.broadcast %cst_7 : f32 to vector<8x128xf32>
    %10 = arith.maximumf %8, %9 : vector<8x128xf32>
    %11 = arith.truncf %10 : vector<8x128xf32> to vector<8x128xbf16>
    %c0_8 = arith.constant 0 : index
    %c0_9 = arith.constant 0 : index
    %12 = vector.load %arg6[%c0_8, %c0_9] : memref<128x128xbf16, #tpu.memory_space<vmem>>, vector<128x128xbf16>
    %cst_10 = arith.constant dense<0.000000e+00> : vector<8x128xf32>
    %13 = tpu.matmul %11, %12, %cst_10 {dimension_numbers = #tpu.dot_dimension_numbers<[1], [0], [0], [1], [0, 0, 1, 1], [], []>} : vector<8x128xbf16>, vector<128x128xbf16>, vector<8x128xf32> -> vector<8x128xf32>
    %c0_11 = arith.constant 0 : index
    %c0_12 = arith.constant 0 : index
    %14 = vector.load %arg4[%c0_11, %c0_12] : memref<8x128xbf16, #tpu.memory_space<vmem>>, vector<8x128xbf16>
    %cst_13 = arith.constant dense<0.000000e+00> : vector<8x128xf32>
    %15 = tpu.matmul %3, %14, %cst_13 {dimension_numbers = #tpu.dot_dimension_numbers<[1], [0], [0], [1], [0, 0, 1, 1], [], []>} : vector<8x8xbf16>, vector<8x128xbf16>, vector<8x128xf32> -> vector<8x128xf32>
    %16 = arith.addf %13, %15 : vector<8x128xf32>
    %c0_14 = arith.constant 0 : index
    %c0_15 = arith.constant 0 : index
    %17 = vector.load %arg7[%c0_14, %c0_15] : memref<1x128xf32, #tpu.memory_space<vmem>>, vector<1x128xf32>
    %18 = vector.broadcast %17 : vector<1x128xf32> to vector<8x128xf32>
    %19 = arith.addf %16, %18 : vector<8x128xf32>
    %cst_16 = arith.constant 0.000000e+00 : f32
    %20 = vector.broadcast %cst_16 : f32 to vector<8x128xf32>
    %21 = arith.maximumf %19, %20 : vector<8x128xf32>
    %c0_17 = arith.constant 0 : index
    %c0_18 = arith.constant 0 : index
    %22 = vector.load %arg8[%c0_17, %c0_18] : memref<1x128xf32, #tpu.memory_space<vmem>>, vector<1x128xf32>
    %23 = vector.broadcast %22 : vector<1x128xf32> to vector<8x128xf32>
    %24 = arith.mulf %21, %23 : vector<8x128xf32>
    %cst_19 = arith.constant dense<0.000000e+00> : vector<8xf32>
    %25 = vector.multi_reduction <add>, %24, %cst_19 [1] : vector<8x128xf32> to vector<8xf32>
    %26 = vector.shape_cast %25 : vector<8xf32> to vector<8x1xf32>
    %c0_20 = arith.constant 0 : index
    %c0_21 = arith.constant 0 : index
    %27 = vector.load %arg9[%c0_20, %c0_21] : memref<1x1xf32, #tpu.memory_space<vmem>>, vector<1x1xf32>
    %28 = vector.broadcast %27 : vector<1x1xf32> to vector<8x1xf32>
    %29 = arith.addf %26, %28 : vector<8x1xf32>
    %c0_22 = arith.constant 0 : index
    %c0_23 = arith.constant 0 : index
    %30 = vector.load %arg10[%c0_22, %c0_23] : memref<8x1xf32, #tpu.memory_space<vmem>>, vector<8x1xf32>
    tpu.vector_store %arg10[%c0_22, %c0_23], %29 {strides = array<i32>} : memref<8x1xf32, #tpu.memory_space<vmem>>, vector<8x1xf32>,
    return
  }
  func.func @transform_0(%arg0: i32) -> (i32, i32) {
    %c0_i32 = arith.constant 0 : i32
    %c0_i32_0 = arith.constant 0 : i32
    return %arg0, %c0_i32 : i32, i32
  }
  func.func @transform_1(%arg0: i32) -> (i32, i32) {
    %c0_i32 = arith.constant 0 : i32
    %c0_i32_0 = arith.constant 0 : i32
    return %arg0, %c0_i32 : i32, i32
  }
  func.func @transform_2(%arg0: i32) -> (i32, i32) {
    %c0_i32 = arith.constant 0 : i32
    %c0_i32_0 = arith.constant 0 : i32
    %c0_i32_1 = arith.constant 0 : i32
    return %c0_i32, %c0_i32_0 : i32, i32
  }
  func.func @transform_3(%arg0: i32) -> (i32, i32) {
    %c0_i32 = arith.constant 0 : i32
    %c0_i32_0 = arith.constant 0 : i32
    %c0_i32_1 = arith.constant 0 : i32
    return %c0_i32, %c0_i32_0 : i32, i32
  }
  func.func @transform_4(%arg0: i32) -> (i32, i32) {
    %c0_i32 = arith.constant 0 : i32
    %c0_i32_0 = arith.constant 0 : i32
    %c0_i32_1 = arith.constant 0 : i32
    return %c0_i32, %c0_i32_0 : i32, i32
  }
  func.func @transform_5(%arg0: i32) -> (i32, i32) {
    %c0_i32 = arith.constant 0 : i32
    %c0_i32_0 = arith.constant 0 : i32
    %c0_i32_1 = arith.constant 0 : i32
    return %c0_i32, %c0_i32_0 : i32, i32
  }
  func.func @transform_6(%arg0: i32) -> (i32, i32) {
    %c0_i32 = arith.constant 0 : i32
    %c0_i32_0 = arith.constant 0 : i32
    %c0_i32_1 = arith.constant 0 : i32
    return %c0_i32, %c0_i32_0 : i32, i32
  }
  func.func @transform_7(%arg0: i32) -> (i32, i32) {
    %c0_i32 = arith.constant 0 : i32
    %c0_i32_0 = arith.constant 0 : i32
    %c0_i32_1 = arith.constant 0 : i32
    return %c0_i32, %c0_i32_0 : i32, i32
  }
  func.func @transform_8(%arg0: i32) -> (i32, i32) {
    %c0_i32 = arith.constant 0 : i32
    %c0_i32_0 = arith.constant 0 : i32
    %c0_i32_1 = arith.constant 0 : i32
    return %c0_i32, %c0_i32_0 : i32, i32
  }
  func.func @transform_9(%arg0: i32) -> (i32, i32) {
    %c0_i32 = arith.constant 0 : i32
    %c0_i32_0 = arith.constant 0 : i32
    return %arg0, %c0_i32 : i32, i32
  }
}

</mosaic_0001>

<llo_original>
// kernel: tpu_custom_call.1
$region0: #{tpu_custom_call.1}
  #allocation0 [shape = 'u32[]', space=smem, size = 0x4, offset = 0x4, fixed_abs, tag = 'smem constant byte address 0x4 - core index']
  #allocation1 [shape = 'u32[72,128]{1,0:T(1,128)}', space=vmem, size = 0x9000, scoped, tag = 'internal scratch']
  #allocation2 [shape = 'f32[1,1]{1,0:T(1,128)S(1)}', space=vmem, size = 0x200, scoped, tag = 'scoped memory for tpu_custom_call.1']
  %s0 = inlined_call_operand.hbm [shape: f32[8,32], index: 0, kind: input, shape index: {}]
  %s1 = inlined_call_operand.hbm [shape: f32[8,8], index: 1, kind: input, shape index: {}]
  %s2 = inlined_call_operand.hbm [shape: bf16[32,128], index: 2, kind: input, shape index: {}]
  %s3 = inlined_call_operand.vmem [shape: bf16[8,128], index: 3, kind: input, shape index: {}]
  %s4 = inlined_call_operand.vmem [shape: f32[1,128], index: 4, kind: input, shape index: {}]
  %s5 = inlined_call_operand.hbm [shape: bf16[128,128], index: 5, kind: input, shape index: {}]
  %s6 = inlined_call_operand.vmem [shape: f32[1,128], index: 6, kind: input, shape index: {}]
  %s7 = inlined_call_operand.vmem [shape: f32[1,128], index: 7, kind: input, shape index: {}]
  %s8 = inlined_call_operand.<no memory space> [shape: f32[1,1], index: 8, kind: input, shape index: {}]
  %s9 = inlined_call_operand.vmem [shape: f32[8,1], index: 9, kind: output, shape index: {}]
  %s10 = sld [smem:[#allocation0]]
  $region62: #{tpu_custom_call.1} parent=0
    _
  %s12 = ssub.s32 1, %s10
  %s13 = scalar_select 0, %s12, %s10
  %v14 = vstv %s8
  %15 = vst [vmem:[#allocation2] sm:$0x1] %v14
  $region1: #{tpu_custom_call.1} parent=0
    #allocation3 [shape = 'u8[4096]{0}', space=vmem, size = 0x1000, scoped, tag = 'input window, operand 0, single buffered']
    #allocation4 [shape = 's32[1]{0}', space=sflag, size = 0x4, scoped, tag = 'scoped memory for tpu_custom_call.1']
    #allocation5 [shape = 'u8[4096]{0}', space=vmem, size = 0x1000, scoped, tag = 'input window, operand 1, single buffered']
    #allocation6 [shape = 's32[1]{0}', space=sflag, size = 0x4, scoped, tag = 'scoped memory for tpu_custom_call.1']
    #allocation7 [shape = 'u8[8192]{0}', space=vmem, size = 0x2000, scoped, tag = 'input window, operand 2, single buffered']
    #allocation8 [shape = 'u8[32768]{0}', space=vmem, size = 0x8000, scoped, tag = 'input window, operand 5, single buffered']
    #allocation9 [shape = 's32[1]{0}', space=sflag, size = 0x4, scoped, tag = 'scoped memory for tpu_custom_call.1']
    %16 = vsyncpa [#allocation4], 0
    %17 = vsyncpa [#allocation6], 0
    %18 = vsyncpa [#allocation9], 0
    // Predicated region
    $region2: #{tpu_custom_call.1} parent=1 // pred_check
      _
    $region3: #{tpu_custom_call.1} parent=1 // pred_check_branch
      %20 = sbr.rel (0) target = $region5
    $region4: #{tpu_custom_call.1} parent=1 // pred_region
      %22 = vsyncadd [#allocation4], 0
      %s24 = sshll.u32 %s0, 4
      %s25 = int_to_ptr.hbm [resolvable:$true] %s24
      %s26 = sshll.u32 [#allocation3], 4
      %s27 = int_to_ptr.vmem [resolvable:$true] %s26
      %29 = dma.hbm_to_vmem [thread:$0]  %s25, 128, %s27, [#allocation4]
    $region5: #{tpu_custom_call.1} parent=1 // pred_fallthru
      _
    // Predicated region
    $region6: #{tpu_custom_call.1} parent=1 // pred_check
      _
    $region7: #{tpu_custom_call.1} parent=1 // pred_check_branch
      %31 = sbr.rel (0) target = $region9
    $region8: #{tpu_custom_call.1} parent=1 // pred_region
      %33 = vsyncadd [#allocation6], 0
      %s35 = sshll.u32 %s1, 4
      %s36 = int_to_ptr.hbm [resolvable:$true] %s35
      %s37 = sshll.u32 [#allocation5], 4
      %s38 = int_to_ptr.vmem [resolvable:$true] %s37
      %40 = dma.hbm_to_vmem [thread:$0]  %s36, 128, %s38, [#allocation6]
    $region9: #{tpu_custom_call.1} parent=1 // pred_fallthru
      _
    // Predicated region
    $region10: #{tpu_custom_call.1} parent=1 // pred_check
      _
    $region11: #{tpu_custom_call.1} parent=1 // pred_check_branch
      %42 = sbr.rel (0) target = $region13
    $region12: #{tpu_custom_call.1} parent=1 // pred_region
      %44 = vsyncadd [#allocation6], 0
      %s45 = sshll.u32 %s2, 4
      %s46 = int_to_ptr.hbm [resolvable:$true] %s45
      %s47 = sshll.u32 [#allocation7], 4
      %s48 = int_to_ptr.vmem [resolvable:$true] %s47
      %53 = dma.hbm_to_vmem [thread:$0]  %s46, 256, %s48, [#allocation6], 64, 64, 4
    $region13: #{tpu_custom_call.1} parent=1 // pred_fallthru
      _
    // Predicated region
    $region14: #{tpu_custom_call.1} parent=1 // pred_check
      _
    $region15: #{tpu_custom_call.1} parent=1 // pred_check_branch
      %55 = sbr.rel (0) target = $region17
    $region16: #{tpu_custom_call.1} parent=1 // pred_region
      _
    $region17: #{tpu_custom_call.1} parent=1 // pred_fallthru
      _
    // Predicated region
    $region18: #{tpu_custom_call.1} parent=1 // pred_check
      _
    $region19: #{tpu_custom_call.1} parent=1 // pred_check_branch
      %57 = sbr.rel (0) target = $region21
    $region20: #{tpu_custom_call.1} parent=1 // pred_region
      _
    $region21: #{tpu_custom_call.1} parent=1 // pred_fallthru
      _
    // Predicated region
    $region22: #{tpu_custom_call.1} parent=1 // pred_check
      _
    $region23: #{tpu_custom_call.1} parent=1 // pred_check_branch
      %59 = sbr.rel (0) target = $region25
    $region24: #{tpu_custom_call.1} parent=1 // pred_region
      %61 = vsyncadd [#allocation9], 0
      %s62 = sshll.u32 %s5, 4
      %s63 = int_to_ptr.hbm [resolvable:$true] %s62
      %s64 = sshll.u32 [#allocation8], 4
      %s65 = int_to_ptr.vmem [resolvable:$true] %s64
      %70 = dma.hbm_to_vmem [thread:$0]  %s63, 1024, %s65, [#allocation9], 64, 64, 4
    $region25: #{tpu_custom_call.1} parent=1 // pred_fallthru
      _
    // Predicated region
    $region26: #{tpu_custom_call.1} parent=1 // pred_check
      _
    $region27: #{tpu_custom_call.1} parent=1 // pred_check_branch
      %72 = sbr.rel (0) target = $region29
    $region28: #{tpu_custom_call.1} parent=1 // pred_region
      _
    $region29: #{tpu_custom_call.1} parent=1 // pred_fallthru
      _
    // Predicated region
    $region30: #{tpu_custom_call.1} parent=1 // pred_check
      _
    $region31: #{tpu_custom_call.1} parent=1 // pred_check_branch
      %74 = sbr.rel (0) target = $region33
    $region32: #{tpu_custom_call.1} parent=1 // pred_region
      _
    $region33: #{tpu_custom_call.1} parent=1 // pred_fallthru
      _
    // Predicated region
    $region34: #{tpu_custom_call.1} parent=1 // pred_check
      _
    $region35: #{tpu_custom_call.1} parent=1 // pred_check_branch
      %76 = sbr.rel (0) target = $region37
    $region36: #{tpu_custom_call.1} parent=1 // pred_region
      _
    $region37: #{tpu_custom_call.1} parent=1 // pred_fallthru
      _
    // Predicated region
    $region38: #{tpu_custom_call.1} parent=1 // pred_check
      _
    $region39: #{tpu_custom_call.1} parent=1 // pred_check_branch
      %78 = sbr.rel (0) target = $region41
    $region40: #{tpu_custom_call.1} parent=1 // pred_region
      %80 = dma.done [#allocation4], 128
    $region41: #{tpu_custom_call.1} parent=1 // pred_fallthru
      _
    // Predicated region
    $region42: #{tpu_custom_call.1} parent=1 // pred_check
      _
    $region43: #{tpu_custom_call.1} parent=1 // pred_check_branch
      %82 = sbr.rel (0) target = $region45
    $region44: #{tpu_custom_call.1} parent=1 // pred_region
      %84 = dma.done [#allocation6], 128
    $region45: #{tpu_custom_call.1} parent=1 // pred_fallthru
      _
    // Predicated region
    $region46: #{tpu_custom_call.1} parent=1 // pred_check
      _
    $region47: #{tpu_custom_call.1} parent=1 // pred_check_branch
      %86 = sbr.rel (0) target = $region49
    $region48: #{tpu_custom_call.1} parent=1 // pred_region
      %88 = dma.done [#allocation6], 256
    $region49: #{tpu_custom_call.1} parent=1 // pred_fallthru
      _
    // Predicated region
    $region50: #{tpu_custom_call.1} parent=1 // pred_check
      _
    $region51: #{tpu_custom_call.1} parent=1 // pred_check_branch
      %90 = sbr.rel (0) target = $region53
    $region52: #{tpu_custom_call.1} parent=1 // pred_region
      %92 = dma.done [#allocation9], 1024
    $region53: #{tpu_custom_call.1} parent=1 // pred_fallthru
      _
    %v94 = vld [vmem:[#allocation3] sm:$0xff]
    %v95 = vpack.c.bf16 %v94, %v94
    %v96 = vld [vmem:[#allocation5] sm:$0xff]
    %v97 = vpack.c.bf16 %v96, %v96
    %v98 = vld [vmem:[#allocation7] sm:$0xf]
    %v99 = vld [vmem:[#allocation7 + $0x4] sm:$0xf]
    %v100 = vld [vmem:[#allocation7 + $0x8] sm:$0xf]
    %v101 = vld [vmem:[#allocation7 + $0xc] sm:$0xf]
    %v102 = vld [vmem:[%s4] sm:$0x1]
    %v104 = vperm.slane %v102, 0
    %v110 = vunpack.c.l.b16 %v98
    %v111 = vunpack.c.l.b16 %v99
    %v112 = vunpack.c.l.b16 %v100
    %v113 = vunpack.c.l.b16 %v101
    %v114 = vpack.c.b16 %v111, %v110
    %v115 = vpack.c.b16 %v113, %v112
    %vm118 = vcmask 261120
    %v120 = vsel %vm118, %v95, 0
    %122 = vmatpush.bf16.msra.mxu0 0
    %123 = vmatpush.bf16.msra.mxu0 0
    %124 = vmatpush.bf16.msra.mxu0 0
    %125 = vmatpush.bf16.msra.mxu0 0
    %126 = vmatpush.bf16.msra.mxu0 0
    %127 = vmatpush.bf16.msra.mxu0 0
    %128 = vmatpush.bf16.msra.mxu0 %v115
    %129 = vmatpush.bf16.msra.mxu0 %v114
    %130 = vmatmul.bf16.gmra.mxu0 %v120
    %v131 = vpop.f32.mrf.mxu0
    %v132 = vadd.f32 %v104, %v131
    %v133 = vpop.f32.mrf.mxu0
    %134 = vdwg.mxu0
    %v135 = vmax.f32 %v132, 0.0
    %v136 = vpack.c.bf16 %v135, %v135
    %v137 = vld [vmem:[#allocation8] sm:$0xf]
    %v138 = vld [vmem:[#allocation8 + $0x4] sm:$0xf]
    %v139 = vld [vmem:[#allocation8 + $0x8] sm:$0xf]
    %v140 = vld [vmem:[#allocation8 + $0xc] sm:$0xf]
    %v141 = vld [vmem:[#allocation8 + $0x10] sm:$0xf]
    %v142 = vld [vmem:[#allocation8 + $0x14] sm:$0xf]
    %v143 = vld [vmem:[#allocation8 + $0x18] sm:$0xf]
    %v144 = vld [vmem:[#allocation8 + $0x1c] sm:$0xf]
    %v145 = vld [vmem:[#allocation8 + $0x20] sm:$0xf]
    %v146 = vld [vmem:[#allocation8 + $0x24] sm:$0xf]
    %v147 = vld [vmem:[#allocation8 + $0x28] sm:$0xf]
    %v148 = vld [vmem:[#allocation8 + $0x2c] sm:$0xf]
    %v149 = vld [vmem:[#allocation8 + $0x30] sm:$0xf]
    %v150 = vld [vmem:[#allocation8 + $0x34] sm:$0xf]
    %v151 = vld [vmem:[#allocation8 + $0x38] sm:$0xf]
    %v152 = vld [vmem:[#allocation8 + $0x3c] sm:$0xf]
    %v153 = vld [vmem:[%s3] sm:$0xf]
    %vm154 = vcmask 64512
    %v156 = vsel %vm154, %v97, 0
    %vm158 = vcmask 1043456
    %v160 = vsel %vm158, %v153, 0
    %162 = vmatpush.bf16.msra.mxu0 0
    %163 = vmatpush.bf16.msra.mxu0 0
    %164 = vmatpush.bf16.msra.mxu0 0
    %165 = vmatpush.bf16.msra.mxu0 0
    %166 = vmatpush.bf16.msra.mxu0 0
    %167 = vmatpush.bf16.msra.mxu0 0
    %168 = vmatpush.bf16.msra.mxu0 0
    %169 = vmatpush.bf16.msra.mxu0 %v160
    %170 = vmatmul.bf16.gmra.mxu0 %v156
    %v171 = vpop.f32.mrf.mxu0
    %v172 = vadd.f32 0.0, %v171
    %v173 = vpop.f32.mrf.mxu0
    %174 = vdwg.mxu0
    %v191 = vunpack.c.l.b16 %v137
    %v192 = vunpack.c.l.b16 %v138
    %v193 = vunpack.c.l.b16 %v139
    %v194 = vunpack.c.l.b16 %v140
    %v195 = vunpack.c.l.b16 %v141
    %v196 = vunpack.c.l.b16 %v142
    %v197 = vunpack.c.l.b16 %v143
    %v198 = vunpack.c.l.b16 %v144
    %v199 = vunpack.c.l.b16 %v145
    %v200 = vunpack.c.l.b16 %v146
    %v201 = vunpack.c.l.b16 %v147
    %v202 = vunpack.c.l.b16 %v148
    %v203 = vunpack.c.l.b16 %v149
    %v204 = vunpack.c.l.b16 %v150
    %v205 = vunpack.c.l.b16 %v151
    %v206 = vunpack.c.l.b16 %v152
    %v207 = vpack.c.b16 %v192, %v191
    %v208 = vpack.c.b16 %v194, %v193
    %v209 = vpack.c.b16 %v196, %v195
    %v210 = vpack.c.b16 %v198, %v197
    %v211 = vpack.c.b16 %v200, %v199
    %v212 = vpack.c.b16 %v202, %v201
    %v213 = vpack.c.b16 %v204, %v203
    %v214 = vpack.c.b16 %v206, %v205
    %223 = vmatpush.bf16.msra.mxu0 %v214
    %224 = vmatpush.bf16.msra.mxu0 %v213
    %225 = vmatpush.bf16.msra.mxu0 %v212
    %226 = vmatpush.bf16.msra.mxu0 %v211
    %227 = vmatpush.bf16.msra.mxu0 %v210
    %228 = vmatpush.bf16.msra.mxu0 %v209
    %229 = vmatpush.bf16.msra.mxu0 %v208
    %230 = vmatpush.bf16.msra.mxu0 %v207
    %231 = vmatmul.bf16.gmra.mxu0 %v136
    %v232 = vpop.f32.mrf.mxu0
    %v233 = vadd.f32 %v172, %v232
    %v234 = vpop.f32.mrf.mxu0
    %235 = vdwg.mxu0
    %v236 = vld [vmem:[%s6] sm:$0x1]
    %v238 = vperm.slane %v236, 0
    %v240 = vadd.f32 %v233, %v238
    %v241 = vmax.f32 %v240, 0.0
    %v242 = vld [vmem:[%s7] sm:$0x1]
    %v244 = vperm.slane %v242, 0
    %v246 = vmul.f32 %v241, %v244
    %247 = vadd.xlane.f32.xlu0 %v246
    %v248 = vpop.xlane.xlu0 %247
    %v249 = vld [vmem:[#allocation2] sm:$0x1]
    %v251 = vperm.slane %v249, 0
    %v253 = vadd.f32 %v248, %v251
    %vm254 = vcmask 7168
    %255 = vst.msk [vmem:[%s9] sm:$0xff] %vm254, %v253
    // Predicated region
    $region54: #{tpu_custom_call.1} parent=1 // pred_check
      _
    $region55: #{tpu_custom_call.1} parent=1 // pred_check_branch
      %257 = sbr.rel (0) target = $region57
    $region56: #{tpu_custom_call.1} parent=1 // pred_region
      _
    $region57: #{tpu_custom_call.1} parent=1 // pred_fallthru
      _
    // Predicated region
    $region58: #{tpu_custom_call.1} parent=1 // pred_check
      _
    $region59: #{tpu_custom_call.1} parent=1 // pred_check_branch
      %259 = sbr.rel (0) target = $region61
    $region60: #{tpu_custom_call.1} parent=1 // pred_region
      _
    $region61: #{tpu_custom_call.1} parent=1 // pred_fallthru
      _
    %260 = vsyncpa [#allocation4], 1
    %261 = vsyncpa [#allocation6], 1
    %262 = vsyncpa [#allocation9], 1

</llo_original>
